<compile_context>
chip_gen: v7x
topology: tpu7x:2x2x1
jax: 0.10.0
libtpu: 0.0.40
codegen_flags: <defaults>
</compile_context>

<pallas_src>
import functools

import jax
import jax.numpy as jnp
from jax.experimental import pallas as pl
from jax.experimental.pallas import tpu as pltpu


# --------------------------------------------------------------------------- #
# Kernel                                                                      #
# --------------------------------------------------------------------------- #
def attention_kernel(x_ref, w_ref, b_ref, ctx_ref, o_ref, *, mm_dtype,
                     approx_reciprocal):
    TB, S, I = x_ref.shape
    O = w_ref.shape[1]

    x = x_ref[...]                                   # (TB, S, I) f32
    w = w_ref[...]                                   # (I, O)     pre-cast mm_dtype
    bias = b_ref[...]                                # (1, O)     f32
    ctx = ctx_ref[...]                               # (S or 1, O) f32

    # hidden = tanh(x @ W + b): one fused (TB*S, I) @ (I, O) MXU matmul with
    # f32 accumulation; only x needs a per-step cast (W arrives pre-cast).
    x2 = x.reshape(TB * S, I).astype(mm_dtype)
    h = jnp.tanh(
        jnp.dot(x2, w, preferred_element_type=jnp.float32) + bias
    ).reshape(TB, S, O)                              # (TB, S, O) f32

    # attention logits + numerically stable softmax over S (lane axis).
    logits = jnp.sum(h * ctx[None], axis=-1)         # (TB, S)
    m = jnp.max(logits, axis=-1, keepdims=True)      # (TB, 1)
    e = jnp.exp(logits - m)                          # (TB, S)
    denom = jnp.sum(e, axis=-1, keepdims=True)       # (TB, 1)
    if approx_reciprocal:
        attn = e * pl.reciprocal(denom, approx=True)   # EUP slot, ~free
    else:
        attn = e / denom                               # exact parity

    # Weighted sum over S: f32 VPU broadcast-multiply + cross-sublane reduce.
    # (A batched MXU einsum here is TB separate M=1 matmuls plus an attn
    #  relayout and would force attn to bf16 — worse on every generation.)
    out = jnp.sum(x * attn[:, :, None], axis=1)      # (TB, I) f32
    o_ref[...] = out.astype(o_ref.dtype)             # dense, lane-aligned store


# --------------------------------------------------------------------------- #
# Wrapper helpers                                                             #
# --------------------------------------------------------------------------- #
def _vmem_capacity_bytes():
    try:
        return int(pltpu.get_tpu_info().vmem_capacity_bytes)
    except Exception:
        return 64 * 1024 * 1024        # conservative: v7x per-TensorCore VMEM


def _per_step_vmem_bytes(tb, S, I, O, mm_bytes):
    """Rough per-grid-step VMEM footprint (double-buffered pipelined blocks)."""
    x_blocks = 2 * tb * S * I * 4                   # f32 x tile, 2 buffers
    w_blocks = 2 * I * O * mm_bytes                 # grid-invariant, buffered
    ctx_blocks = 2 * S * O * 4
    bias_blocks = 2 * O * 4
    out_blocks = 2 * tb * I * 4
    temps = tb * S * I * mm_bytes + tb * S * O * 4 + 4 * tb * S * 4
    return x_blocks + w_blocks + ctx_blocks + bias_blocks + out_blocks + temps


def _pick_tb(B, S, I, O, mm_bytes, budget):
    """Largest multiple-of-8 divisor of B leaving a grid >= 2 steps that fits
    the VMEM budget; falls back to tb=B for tiny batches."""
    cands = [t for t in range(8, B, 8) if B % t == 0]
    if not cands:
        return B
    fitting = [t for t in cands
               if _per_step_vmem_bytes(t, S, I, O, mm_bytes) <= budget]
    return max(fitting) if fitting else min(cands)


def _pad_axis(a, axis, mult):
    pad = (-a.shape[axis]) % mult
    if pad == 0:
        return a
    widths = [(0, 0)] * a.ndim
    widths[axis] = (0, pad)
    return jnp.pad(a, widths)


# --------------------------------------------------------------------------- #
# Public forward                                                              #
# --------------------------------------------------------------------------- #
def attention_forward(x, w_t, bias, ctx, *, tb=None, matmul_dtype=jnp.bfloat16,
                      approx_reciprocal=True, x_buffers=2):
    """Pallas forward for the HAN Attention module.

    x:    (B, S, I) float32 input.
    w_t:  (I, O)    nn.Linear weight transposed to `x @ W` form.
    bias: (1, O)    nn.Linear bias.
    ctx:  (S, O)    context vectors (per_label_attention=True needs
                    num_classes == S); a (1, O) ctx (shared vector) also works.

    tb:   batch tile per grid step.  Default: largest multiple of 8 dividing B
          that keeps the grid >= 2 steps (DMA/compute pipelining; lets the
          batch axis shard across v7x's two TensorCores) while fitting the
          chip's VMEM budget.  Falls back to tb=B for tiny batches.
    matmul_dtype: MXU operand dtype for the projection.  bf16 is the right
          default on v5e/v6e/v7x (f32 accumulation is kept); pass jnp.float32
          for exact-precision runs.
    approx_reciprocal: EUP approximate reciprocal for the softmax denominator
          (~1e-3 relative on attn); set False for exact training parity.
    x_buffers: pipeline depth for the x stream; raise to 3 on v5e if the trace
          shows exposed x DMA.
    """
    B, S, I = x.shape
    O = w_t.shape[1]
    out_dtype = x.dtype
    assert ctx.shape[0] in (1, S), "context rows must be 1 or seq_len"

    # Lane-pad I and O to multiples of 128 (semantics preserving: padded W
    # rows/cols, bias cols and ctx cols are zero) so the projection matmul and
    # the output store are 128-lane dense.
    I_p = I + (-I) % 128
    O_p = O + (-O) % 128
    if I_p != I:
        x = _pad_axis(x, 2, 128)
        w_t = _pad_axis(w_t, 0, 128)
    if O_p != O:
        w_t = _pad_axis(w_t, 1, 128)
        bias = _pad_axis(bias, 1, 128)
        ctx = _pad_axis(ctx, 1, 128)
    ctx_rows = ctx.shape[0]

    # Pre-cast the grid-invariant matmul operand once, in the wrapper.
    w_t = w_t.astype(matmul_dtype)
    mm_bytes = jnp.dtype(matmul_dtype).itemsize

    cap = _vmem_capacity_bytes()
    budget = int(cap * 0.6)
    if tb is None:
        tb = _pick_tb(B, S, I_p, O_p, mm_bytes, budget)
    assert B % tb == 0, "batch tile must divide batch"
    grid = (B // tb,)

    est = _per_step_vmem_bytes(tb, S, I_p, O_p, mm_bytes)
    vmem_limit = int(min(cap, max(32 << 20, int(est * 1.5))))

    x_spec_kwargs = {}
    if x_buffers is not None and x_buffers > 2:
        x_spec_kwargs["pipeline_mode"] = pl.Buffered(x_buffers)
    x_spec = pl.BlockSpec((tb, S, I_p), lambda b: (b, 0, 0), **x_spec_kwargs)

    cost = pl.CostEstimate(
        flops=int(2 * B * S * I_p * O_p + 2 * B * S * O_p + 4 * B * S * I_p),
        transcendentals=int(B * S * O_p + B * S),
        bytes_accessed=int(B * S * I_p * 4 + I_p * O_p * mm_bytes
                           + O_p * 4 + ctx_rows * O_p * 4 + B * I_p * 4),
    )

    kernel = functools.partial(attention_kernel, mm_dtype=matmul_dtype,
                               approx_reciprocal=approx_reciprocal)

    out = pl.pallas_call(
        kernel,
        out_shape=jax.ShapeDtypeStruct((B, I_p), out_dtype),
        grid_spec=pltpu.PrefetchScalarGridSpec(
            num_scalar_prefetch=0,
            grid=grid,
            in_specs=[
                x_spec,                                             # batch tile
                pl.BlockSpec((I_p, O_p), lambda b: (0, 0)),         # invariant W
                pl.BlockSpec((1, O_p), lambda b: (0, 0)),           # invariant bias
                pl.BlockSpec((ctx_rows, O_p), lambda b: (0, 0)),    # invariant ctx
            ],
            out_specs=pl.BlockSpec((tb, I_p), lambda b: (b, 0)),
        ),
        compiler_params=pltpu.CompilerParams(
            dimension_semantics=("parallel",),
            vmem_limit_bytes=vmem_limit),
        cost_estimate=cost,
    )(x, w_t, bias, ctx)

    return out[:, :I] if I_p != I else out


# --------------------------------------------------------------------------- #
# Pure-JAX reference (mirrors the PyTorch forward)                            #
# --------------------------------------------------------------------------- #
def attention_reference(x, w_t, bias, ctx, matmul_dtype=jnp.float32):
    h = jnp.tanh(
        jnp.einsum("bsi,io->bso", x.astype(matmul_dtype), w_t.astype(matmul_dtype),
                   preferred_element_type=jnp.float32) + bias)      # (B, S, O)
    logits = jnp.sum(h * ctx[None], axis=-1)                        # (B, S)
    logits_max = jnp.max(logits, axis=-1, keepdims=True)
    attn = jax.nn.softmax(logits - logits_max, axis=-1)             # (B, S)
    return jnp.sum(x * attn[..., None], axis=-2)                    # (B, I)


if __name__ == "__main__":
    # per_label_attention=True only type-checks in the PyTorch module when
    # num_classes == seq_len, so the demo uses num_classes = S.
    B, S, I, O = 32, 8, 128, 128

    key = jax.random.PRNGKey(0)
    kx, kw, kb, kc = jax.random.split(key, 4)
    x = jax.random.normal(kx, (B, S, I), dtype=jnp.float32)
    w = jax.random.normal(kw, (O, I), dtype=jnp.float32) * 0.1       # nn.Linear weight (O, I)
    bias = jax.random.normal(kb, (O,), dtype=jnp.float32) * 0.1      # nn.Linear bias (O,)
    ctx = jax.random.normal(kc, (S, O), dtype=jnp.float32)           # context_vector (num_classes=S, O)

    w_t = w.T                       # (I, O): x @ W form (MXU friendly)
    bias2d = bias.reshape(1, O)

    # Reference with identically bf16-rounded matmul operands and f32
    # accumulation (precision-agnostic comparison baseline).
    ref_bf16 = attention_reference(x, w_t, bias2d, ctx, matmul_dtype=jnp.bfloat16)

    # 1) bf16 MXU operands + exact reciprocal: tight check, grid of 2 steps
    #    (tb=16 picked automatically), both TCs busy on v7x.
    out_exact = jax.block_until_ready(
        attention_forward(x, w_t, bias2d, ctx, approx_reciprocal=False))
    assert out_exact.shape == (B, I)
    assert jnp.allclose(out_exact, ref_bf16, atol=3e-3, rtol=3e-3), \
        "mismatch vs reference (exact-reciprocal path)"

    # 2) Default fast path (bf16 MXU operands + EUP approximate reciprocal).
    out_fast = jax.block_until_ready(attention_forward(x, w_t, bias2d, ctx))
    assert jnp.allclose(out_fast, ref_bf16, atol=2e-2, rtol=2e-2), \
        "mismatch vs reference (approx-reciprocal path)"

    # 3) Unaligned small shapes: exercises the I/O lane-padding and the tb=B
    #    single-step fallback for tiny batches.
    Bs, Ss, Is, Os = 2, 8, 32, 48
    ks = jax.random.split(jax.random.PRNGKey(0), 4)
    xs = jax.random.normal(ks[0], (Bs, Ss, Is), dtype=jnp.float32)
    ws = jax.random.normal(ks[1], (Os, Is), dtype=jnp.float32) * 0.1
    bs = jax.random.normal(ks[2], (Os,), dtype=jnp.float32) * 0.1
    cs = jax.random.normal(ks[3], (Ss, Os), dtype=jnp.float32)
    out_s = jax.block_until_ready(
        attention_forward(xs, ws.T, bs.reshape(1, Os), cs, approx_reciprocal=False))
    ref_s = attention_reference(xs, ws.T, bs.reshape(1, Os), cs,
                                matmul_dtype=jnp.bfloat16)
    assert out_s.shape == (Bs, Is)
    assert jnp.allclose(out_s, ref_s, atol=3e-3, rtol=3e-3), \
        "mismatch vs reference (padded / small-batch path)"

    # TODO(synk): per_label_attention=False (shared context vector) is supported
    # by passing ctx with shape (1, O); not exercised in this demo.
    print("KERNEL_OK")
</pallas_src>

<mosaic_0001>
module attributes {stable_mosaic.version = 11 : i64} {
  func.func @attention_kernel(%arg0: i32, %arg1: memref<16x8x128xf32, #tpu.memory_space<vmem>>, %arg2: memref<128x128xbf16, #tpu.memory_space<vmem>>, %arg3: memref<1x128xf32, #tpu.memory_space<vmem>>, %arg4: memref<8x128xf32, #tpu.memory_space<vmem>>, %arg5: memref<16x128xf32, #tpu.memory_space<vmem>>) attributes {dimension_semantics = [#tpu.dimension_semantics<parallel>], iteration_bounds = array<i64: 2>, scalar_prefetch = 0 : i64, scratch_operands = 0 : i64, tpu.core_type = #tpu.core_type<tc>, window_params = [{transform_indices = @transform_0, window_bounds = array<i64: 16, 8, 128>}, {pipeline_mode = #tpu.pipeline_mode<synchronous>, transform_indices = @transform_1, window_bounds = array<i64: 128, 128>}, {pipeline_mode = #tpu.pipeline_mode<synchronous>, transform_indices = @transform_2, window_bounds = array<i64: 1, 128>}, {pipeline_mode = #tpu.pipeline_mode<synchronous>, transform_indices = @transform_3, window_bounds = array<i64: 8, 128>}, {transform_indices = @transform_4, window_bounds = array<i64: 16, 128>}]} {
    %c0 = arith.constant 0 : index
    %c0_0 = arith.constant 0 : index
    %c0_1 = arith.constant 0 : index
    %0 = vector.load %arg1[%c0, %c0_0, %c0_1] : memref<16x8x128xf32, #tpu.memory_space<vmem>>, vector<16x8x128xf32>
    %c0_2 = arith.constant 0 : index
    %c0_3 = arith.constant 0 : index
    %1 = vector.load %arg2[%c0_2, %c0_3] : memref<128x128xbf16, #tpu.memory_space<vmem>>, vector<128x128xbf16>
    %c0_4 = arith.constant 0 : index
    %c0_5 = arith.constant 0 : index
    %2 = vector.load %arg3[%c0_4, %c0_5] : memref<1x128xf32, #tpu.memory_space<vmem>>, vector<1x128xf32>
    %c0_6 = arith.constant 0 : index
    %c0_7 = arith.constant 0 : index
    %3 = vector.load %arg4[%c0_6, %c0_7] : memref<8x128xf32, #tpu.memory_space<vmem>>, vector<8x128xf32>
    %4 = vector.shape_cast %0 : vector<16x8x128xf32> to vector<128x128xf32>
    %5 = arith.truncf %4 : vector<128x128xf32> to vector<128x128xbf16>
    %cst = arith.constant dense<0.000000e+00> : vector<128x128xf32>
    %6 = tpu.matmul %5, %1, %cst {dimension_numbers = #tpu.dot_dimension_numbers<[1], [0], [0], [1], [0, 0, 1, 1], [], []>} : vector<128x128xbf16>, vector<128x128xbf16>, vector<128x128xf32> -> vector<128x128xf32>
    %7 = vector.broadcast %2 : vector<1x128xf32> to vector<128x128xf32>
    %8 = arith.addf %6, %7 : vector<128x128xf32>
    %9 = math.tanh %8 : vector<128x128xf32>
    %10 = vector.shape_cast %9 : vector<128x128xf32> to vector<16x8x128xf32>
    %11 = vector.shape_cast %3 : vector<8x128xf32> to vector<1x8x128xf32>
    %12 = vector.broadcast %11 : vector<1x8x128xf32> to vector<16x8x128xf32>
    %13 = arith.mulf %10, %12 : vector<16x8x128xf32>
    %cst_8 = arith.constant dense<0.000000e+00> : vector<16x8xf32>
    %14 = vector.multi_reduction <add>, %13, %cst_8 [2] : vector<16x8x128xf32> to vector<16x8xf32>
    %cst_9 = arith.constant dense<0xFF800000> : vector<16xf32>
    %15 = vector.multi_reduction <maximumf>, %14, %cst_9 [1] : vector<16x8xf32> to vector<16xf32>
    %16 = vector.shape_cast %15 : vector<16xf32> to vector<16x1xf32>
    %17 = vector.broadcast %16 : vector<16x1xf32> to vector<16x8xf32>
    %18 = arith.subf %14, %17 : vector<16x8xf32>
    %19 = math.exp %18 : vector<16x8xf32>
    %cst_10 = arith.constant dense<0.000000e+00> : vector<16xf32>
    %20 = vector.multi_reduction <add>, %19, %cst_10 [1] : vector<16x8xf32> to vector<16xf32>
    %21 = vector.shape_cast %20 : vector<16xf32> to vector<16x1xf32>
    %22 = vector.broadcast %21 : vector<16x1xf32> to vector<16x8xf32>
    %23 = arith.divf %19, %22 : vector<16x8xf32>
    %24 = vector.shape_cast %23 : vector<16x8xf32> to vector<16x8x1xf32>
    %25 = vector.broadcast %24 : vector<16x8x1xf32> to vector<16x8x128xf32>
    %26 = arith.mulf %0, %25 : vector<16x8x128xf32>
    %cst_11 = arith.constant dense<0.000000e+00> : vector<16x128xf32>
    %27 = vector.multi_reduction <add>, %26, %cst_11 [1] : vector<16x8x128xf32> to vector<16x128xf32>
    %c0_12 = arith.constant 0 : index
    %c0_13 = arith.constant 0 : index
    %28 = vector.load %arg5[%c0_12, %c0_13] : memref<16x128xf32, #tpu.memory_space<vmem>>, vector<16x128xf32>
    tpu.vector_store %arg5[%c0_12, %c0_13], %27 {strides = array<i32>} : memref<16x128xf32, #tpu.memory_space<vmem>>, vector<16x128xf32>,
    return
  }
  func.func @transform_0(%arg0: i32) -> (i32, i32, i32) {
    %c0_i32 = arith.constant 0 : i32
    %c0_i32_0 = arith.constant 0 : i32
    %c0_i32_1 = arith.constant 0 : i32
    return %arg0, %c0_i32, %c0_i32_0 : i32, i32, i32
  }
  func.func @transform_1(%arg0: i32) -> (i32, i32) {
    %c0_i32 = arith.constant 0 : i32
    %c0_i32_0 = arith.constant 0 : i32
    %c0_i32_1 = arith.constant 0 : i32
    return %c0_i32, %c0_i32_0 : i32, i32
  }
  func.func @transform_2(%arg0: i32) -> (i32, i32) {
    %c0_i32 = arith.constant 0 : i32
    %c0_i32_0 = arith.constant 0 : i32
    %c0_i32_1 = arith.constant 0 : i32
    return %c0_i32, %c0_i32_0 : i32, i32
  }
  func.func @transform_3(%arg0: i32) -> (i32, i32) {
    %c0_i32 = arith.constant 0 : i32
    %c0_i32_0 = arith.constant 0 : i32
    %c0_i32_1 = arith.constant 0 : i32
    return %c0_i32, %c0_i32_0 : i32, i32
  }
  func.func @transform_4(%arg0: i32) -> (i32, i32) {
    %c0_i32 = arith.constant 0 : i32
    %c0_i32_0 = arith.constant 0 : i32
    return %arg0, %c0_i32 : i32, i32
  }
}

</mosaic_0001>

<llo_original>
// kernel: tpu_custom_call.1
$region0: #{tpu_custom_call.1}
  #allocation0 [shape = 'u32[]', space=smem, size = 0x4, offset = 0x4, fixed_abs, tag = 'smem constant byte address 0x4 - core index']
  #allocation1 [shape = 'u32[144,128]{1,0:T(1,128)}', space=vmem, size = 0x12000, scoped, tag = 'internal scratch']
  %s0 = inlined_call_operand.hbm [shape: f32[32,8,128], index: 0, kind: input, shape index: {}]
  %s1 = inlined_call_operand.hbm [shape: bf16[128,128], index: 1, kind: input, shape index: {}]
  %s2 = inlined_call_operand.vmem [shape: f32[1,128], index: 2, kind: input, shape index: {}]
  %s3 = inlined_call_operand.vmem [shape: f32[8,128], index: 3, kind: input, shape index: {}]
  %s4 = inlined_call_operand.hbm [shape: f32[32,128], index: 4, kind: output, shape index: {}]
  %s5 = sld [smem:[#allocation0]]
  $region57: #{tpu_custom_call.1} parent=0
    _
  %s7 = ssub.s32 1, %s5
  %s8 = scalar_select 0, %s7, %s5
  $region1: #{tpu_custom_call.1} parent=0
    #allocation2 [shape = 'u8[131072]{0}', space=vmem, size = 0x20000, scoped, tag = 'input window, operand 0']
    #allocation3 [shape = 's32[2]{0}', space=sflag, size = 0x8, scoped, tag = 'scoped memory for tpu_custom_call.1']
    #allocation4 [shape = 's32[2]{0}', space=sflag, size = 0x8, scoped, tag = 'scoped memory for tpu_custom_call.1']
    #allocation5 [shape = 'u8[32768]{0}', space=vmem, size = 0x8000, scoped, tag = 'input window, operand 1, single buffered']
    #allocation6 [shape = 's32[1]{0}', space=sflag, size = 0x4, scoped, tag = 'scoped memory for tpu_custom_call.1']
    #allocation7 [shape = 'u8[16384]{0}', space=vmem, size = 0x4000, scoped, tag = 'output window, operand 0']
    %9 = vsyncpa [#allocation3], 0
    %s10 = scalar_lea.sflag [#allocation3], 1
    %11 = vsyncpa %s10, 0
    %12 = vsyncpa [#allocation6], 0
    %13 = vsyncpa [#allocation4], 0
    %s14 = scalar_lea.sflag [#allocation4], 1
    %15 = vsyncpa %s14, 0
    loop: start=0, step=1, limit=4
    $region2: #{tpu_custom_call.1} parent=1 // loop_pre_header
      _
    $region3: #{tpu_custom_call.1} parent=1 // loop_header
      %s17 = sphi 0, %s21
      %p18 = scmp.ge.s32.totalorder %s17, 4
      %s27 = sphi 0, %s29
      %s30 = sphi 0, %s27
      %s31 = sphi 0, %s30
      %s47 = sphi 0, %s31
      %s51 = sphi 0, %s51
      %s53 = sphi 0, %s51
      %s54 = sphi 0, %s53
      %s68 = sphi 0, %s54
      %s72 = sphi 0, %s72
      %s74 = sphi 0, %s72
      %s75 = sphi 0, %s74
      %s89 = sphi 0, %s75
      %s93 = sphi 0, %s93
      %s95 = sphi 0, %s93
      %s96 = sphi 0, %s95
      %s110 = sphi 0, %s96
      %s116 = sphi 0, %s118
      %s119 = sphi 0, %s116
      %s120 = sphi 0, %s119
      %s136 = sphi 0, %s120
    $region4: #{tpu_custom_call.1} parent=1 // loop_header_branch
      %20 = sbr.rel (%p18) target = $region8
    $region5: #{tpu_custom_call.1} parent=1 // loop_body
      %s22 = ssub.s32 %s17, 1
      %s23 = ssub.s32 %s17, 2
      %s24 = sadd.s32 %s17, 1
      %s25 = ssub.s32 %s17, %s24
      %p26 = scmp.eq.s32.totalorder %s25, 0
      %s28 = sadd.s32 %s27, 1
      %s29 = scalar_select %p26, %s27, %s28
      %p32 = pneg %p26
      %p33 = scmp.eq.s32.totalorder %s17, 1
      %p34 = por %p32, %p33
      %p35 = scmp.ne.s32.totalorder %s27, %s30
      %p36 = scmp.eq.s32.totalorder %s17, 0
      %p37 = por %p35, %p36
      %p38 = scmp.ne.s32.totalorder %s27, %s30
      %p39 = scmp.eq.s32.totalorder %s22, 1
      %p40 = por %p38, %p39
      %p41 = scmp.ne.s32.totalorder %s30, %s31
      %p42 = scmp.eq.s32.totalorder %s22, 0
      %p43 = por %p41, %p42
      %p44 = scmp.ne.s32.totalorder %s30, %s31
      %p45 = scmp.eq.s32.totalorder %s23, 1
      %p46 = por %p44, %p45
      %p48 = scmp.ne.s32.totalorder %s31, %s47
      %p49 = scmp.eq.s32.totalorder %s23, 0
      %p50 = por %p48, %p49
      %s52 = sadd.s32 %s51, 1
      %p55 = scmp.eq.s32.totalorder %s17, 1
      %p56 = scmp.ne.s32.totalorder %s51, %s53
      %p57 = scmp.eq.s32.totalorder %s17, 0
      %p58 = por %p56, %p57
      %p59 = scmp.ne.s32.totalorder %s51, %s53
      %p60 = scmp.eq.s32.totalorder %s22, 1
      %p61 = por %p59, %p60
      %p62 = scmp.ne.s32.totalorder %s53, %s54
      %p63 = scmp.eq.s32.totalorder %s22, 0
      %p64 = por %p62, %p63
      %p65 = scmp.ne.s32.totalorder %s53, %s54
      %p66 = scmp.eq.s32.totalorder %s23, 1
      %p67 = por %p65, %p66
      %p69 = scmp.ne.s32.totalorder %s54, %s68
      %p70 = scmp.eq.s32.totalorder %s23, 0
      %p71 = por %p69, %p70
      %s73 = sadd.s32 %s72, 1
      %p76 = scmp.eq.s32.totalorder %s17, 1
      %p77 = scmp.ne.s32.totalorder %s72, %s74
      %p78 = scmp.eq.s32.totalorder %s17, 0
      %p79 = por %p77, %p78
      %p80 = scmp.ne.s32.totalorder %s72, %s74
      %p81 = scmp.eq.s32.totalorder %s22, 1
      %p82 = por %p80, %p81
      %p83 = scmp.ne.s32.totalorder %s74, %s75
      %p84 = scmp.eq.s32.totalorder %s22, 0
      %p85 = por %p83, %p84
      %p86 = scmp.ne.s32.totalorder %s74, %s75
      %p87 = scmp.eq.s32.totalorder %s23, 1
      %p88 = por %p86, %p87
      %p90 = scmp.ne.s32.totalorder %s75, %s89
      %p91 = scmp.eq.s32.totalorder %s23, 0
      %p92 = por %p90, %p91
      %s94 = sadd.s32 %s93, 1
      %p97 = scmp.eq.s32.totalorder %s17, 1
      %p98 = scmp.ne.s32.totalorder %s93, %s95
      %p99 = scmp.eq.s32.totalorder %s17, 0
      %p100 = por %p98, %p99
      %p101 = scmp.ne.s32.totalorder %s93, %s95
      %p102 = scmp.eq.s32.totalorder %s22, 1
      %p103 = por %p101, %p102
      %p104 = scmp.ne.s32.totalorder %s95, %s96
      %p105 = scmp.eq.s32.totalorder %s22, 0
      %p106 = por %p104, %p105
      %p107 = scmp.ne.s32.totalorder %s95, %s96
      %p108 = scmp.eq.s32.totalorder %s23, 1
      %p109 = por %p107, %p108
      %p111 = scmp.ne.s32.totalorder %s96, %s110
      %p112 = scmp.eq.s32.totalorder %s23, 0
      %p113 = por %p111, %p112
      %s114 = ssub.s32 %s17, %s24
      %p115 = scmp.eq.s32.totalorder %s114, 0
      %s117 = sadd.s32 %s116, 1
      %s118 = scalar_select %p115, %s116, %s117
      %p121 = pneg %p115
      %p122 = scmp.eq.s32.totalorder %s17, 1
      %p123 = por %p121, %p122
      %p124 = scmp.ne.s32.totalorder %s116, %s119
      %p125 = scmp.eq.s32.totalorder %s17, 0
      %p126 = por %p124, %p125
      %p127 = scmp.ne.s32.totalorder %s116, %s119
      %p128 = scmp.eq.s32.totalorder %s22, 1
      %p129 = por %p127, %p128
      %p130 = scmp.ne.s32.totalorder %s119, %s120
      %p131 = scmp.eq.s32.totalorder %s22, 0
      %p132 = por %p130, %p131
      %p133 = scmp.ne.s32.totalorder %s119, %s120
      %p134 = scmp.eq.s32.totalorder %s23, 1
      %p135 = por %p133, %p134
      %p137 = scmp.ne.s32.totalorder %s120, %s136
      %p138 = scmp.eq.s32.totalorder %s23, 0
      %p139 = por %p137, %p138
      %p140 = scmp.le.s32.totalorder 1, %s17
      %p141 = scmp.lt.s32.totalorder %s17, 3
      %p142 = pnand %p140, %p141
      %p143 = pneg %p142
      // Predicated region
      $region9: #{tpu_custom_call.1} parent=5 // pred_check
        _
      $region10: #{tpu_custom_call.1} parent=5 // pred_check_branch
        %145 = sbr.rel (%p142) target = $region12
      $region11: #{tpu_custom_call.1} parent=5 // pred_region
        %s146 = ssub.s32 %s17, 1
        // Predicated region
        $region13: #{tpu_custom_call.1} parent=11 // pred_check
          %p147 = pneg %p64
        $region14: #{tpu_custom_call.1} parent=11 // pred_check_branch
          %149 = sbr.rel (%p147) target = $region16
        $region15: #{tpu_custom_call.1} parent=11 // pred_region
          %s151 = ssub.s32 1024, 1024
          %152 = vsyncadd [#allocation6], %s151
          %s153 = sshll.u32 [#allocation5], 4
          %s154 = int_to_ptr.vmem [resolvable:$true] %s153
          %159 = dma.hbm_to_vmem [thread:$0]  %s1, 1024, %s154, [#allocation6], 64, 64, 4
        $region16: #{tpu_custom_call.1} parent=11 // pred_fallthru
          _
        // Predicated region
        $region17: #{tpu_custom_call.1} parent=11 // pred_check
          %p160 = pneg %p85
        $region18: #{tpu_custom_call.1} parent=11 // pred_check_branch
          %162 = sbr.rel (%p160) target = $region20
        $region19: #{tpu_custom_call.1} parent=11 // pred_region
          _
        $region20: #{tpu_custom_call.1} parent=11 // pred_fallthru
          _
        // Predicated region
        $region21: #{tpu_custom_call.1} parent=11 // pred_check
          %p163 = pneg %p106
        $region22: #{tpu_custom_call.1} parent=11 // pred_check_branch
          %165 = sbr.rel (%p163) target = $region24
        $region23: #{tpu_custom_call.1} parent=11 // pred_region
          _
        $region24: #{tpu_custom_call.1} parent=11 // pred_fallthru
          _
      $region12: #{tpu_custom_call.1} parent=5 // pred_fallthru
        _
      %p166 = scmp.lt.s32.totalorder %s17, 2
      // Predicated region
      $region25: #{tpu_custom_call.1} parent=5 // pred_check
        %p167 = pneg %p166
      $region26: #{tpu_custom_call.1} parent=5 // pred_check_branch
        %169 = sbr.rel (%p167) target = $region28
      $region27: #{tpu_custom_call.1} parent=5 // pred_region
        // Predicated region
        $region29: #{tpu_custom_call.1} parent=27 // pred_check
          %p170 = pneg %p37
        $region30: #{tpu_custom_call.1} parent=27 // pred_check_branch
          %172 = sbr.rel (%p170) target = $region32
        $region31: #{tpu_custom_call.1} parent=27 // pred_region
          %s173 = sand.u32 %s27, 1
          %s174 = scalar_lea.sflag [#allocation3], %s173
          %s175 = sand.u32 %s27, 1
          %s176 = smul.addr %s175, 128
          %s177 = scalar_lea.vmem [#allocation2], %s176
          %s178 = smul.u32 16, %s17
          %s180 = ssub.s32 2048, 2048
          %181 = vsyncadd %s174, %s180
          %s182 = smul.addr %s178, 128
          %s183 = scalar_lea.hbm %s0, %s182
          %s184 = sshll.u32 %s177, 4
          %s185 = int_to_ptr.vmem [resolvable:$true] %s184
          %190 = dma.hbm_to_vmem [thread:$0]  %s183, 2048, %s185, %s174, 128, 128, 8
        $region32: #{tpu_custom_call.1} parent=27 // pred_fallthru
          _
      $region28: #{tpu_custom_call.1} parent=5 // pred_fallthru
        _
      %p191 = scmp.le.s32.totalorder 1, %s17
      %p192 = scmp.lt.s32.totalorder %s17, 3
      %p193 = pnand %p191, %p192
      %p194 = pneg %p193
      // Predicated region
      $region33: #{tpu_custom_call.1} parent=5 // pred_check
        _
      $region34: #{tpu_custom_call.1} parent=5 // pred_check_branch
        %196 = sbr.rel (%p193) target = $region36
      $region35: #{tpu_custom_call.1} parent=5 // pred_region
        %s197 = ssub.s32 %s17, 1
        %s198 = sand.u32 %s30, 1
        %s199 = scalar_lea.sflag [#allocation3], %s198
        %s200 = sand.u32 %s30, 1
        %s201 = smul.addr %s200, 128
        %s202 = scalar_lea.vmem [#allocation2], %s201
        // Predicated region
        $region37: #{tpu_custom_call.1} parent=35 // pred_check
          %p203 = pneg %p43
        $region38: #{tpu_custom_call.1} parent=35 // pred_check_branch
          %205 = sbr.rel (%p203) target = $region40
        $region39: #{tpu_custom_call.1} parent=35 // pred_region
          %206 = dma.done %s199, 2048
        $region40: #{tpu_custom_call.1} parent=35 // pred_fallthru
          _
        // Predicated region
        $region41: #{tpu_custom_call.1} parent=35 // pred_check
          %p207 = pneg %p64
        $region42: #{tpu_custom_call.1} parent=35 // pred_check_branch
          %209 = sbr.rel (%p207) target = $region44
        $region43: #{tpu_custom_call.1} parent=35 // pred_region
          %210 = dma.done [#allocation6], 1024
        $region44: #{tpu_custom_call.1} parent=35 // pred_fallthru
          _
        %s211 = sand.u32 %s30, 1
        %s212 = scalar_lea.sflag [#allocation3], %s211
        %s213 = sand.u32 %s30, 1
        %s214 = smul.addr %s213, 128
        %s215 = scalar_lea.vmem [#allocation2], %s214
        %p216 = pneg %p43
        %p217 = pneg %p40
        %p218 = pneg %p64
        %p219 = pneg %p61
        %p220 = pneg %p85
        %p221 = pneg %p82
        %p222 = pneg %p106
        %p223 = pneg %p103
        %p224 = pneg %p132
        %p225 = pneg %p129
        %s226 = sand.u32 %s119, 1
        %s227 = scalar_lea.sflag [#allocation4], %s226
        %s228 = sand.u32 %s119, 1
        %s229 = smul.addr %s228, 16
        %s230 = scalar_lea.vmem [#allocation7], %s229
        %s231 = smul.u32 16, %s22
        %s232 = smul.u32 2, %s22
        %v234 = vld [vmem:[%s202] sm:$0xff]
        %v235 = vld [vmem:[%s202 + $0x8] sm:$0xff]
        %v236 = vld [vmem:[%s202 + $0x10] sm:$0xff]
        %v237 = vld [vmem:[%s202 + $0x18] sm:$0xff]
        %v238 = vld [vmem:[%s202 + $0x20] sm:$0xff]
        %v239 = vld [vmem:[%s202 + $0x28] sm:$0xff]
        %v240 = vld [vmem:[%s202 + $0x30] sm:$0xff]
        %v241 = vld [vmem:[%s202 + $0x38] sm:$0xff]
        %v242 = vld [vmem:[%s202 + $0x40] sm:$0xff]
        %v243 = vld [vmem:[%s202 + $0x48] sm:$0xff]
        %v244 = vld [vmem:[%s202 + $0x50] sm:$0xff]
        %v245 = vld [vmem:[%s202 + $0x58] sm:$0xff]
        %v246 = vld [vmem:[%s202 + $0x60] sm:$0xff]
        %v247 = vld [vmem:[%s202 + $0x68] sm:$0xff]
        %v248 = vld [vmem:[%s202 + $0x70] sm:$0xff]
        %v249 = vld [vmem:[%s202 + $0x78] sm:$0xff]
        %v250 = vld [vmem:[#allocation5] sm:$0xf]
        %v251 = vld [vmem:[#allocation5 + $0x4] sm:$0xf]
        %v252 = vld [vmem:[#allocation5 + $0x8] sm:$0xf]
        %v253 = vld [vmem:[#allocation5 + $0xc] sm:$0xf]
        %v254 = vld [vmem:[#allocation5 + $0x10] sm:$0xf]
        %v255 = vld [vmem:[#allocation5 + $0x14] sm:$0xf]
        %v256 = vld [vmem:[#allocation5 + $0x18] sm:$0xf]
        %v257 = vld [vmem:[#allocation5 + $0x1c] sm:$0xf]
        %v258 = vld [vmem:[#allocation5 + $0x20] sm:$0xf]
        %v259 = vld [vmem:[#allocation5 + $0x24] sm:$0xf]
        %v260 = vld [vmem:[#allocation5 + $0x28] sm:$0xf]
        %v261 = vld [vmem:[#allocation5 + $0x2c] sm:$0xf]
        %v262 = vld [vmem:[#allocation5 + $0x30] sm:$0xf]
        %v263 = vld [vmem:[#allocation5 + $0x34] sm:$0xf]
        %v264 = vld [vmem:[#allocation5 + $0x38] sm:$0xf]
        %v265 = vld [vmem:[#allocation5 + $0x3c] sm:$0xf]
        %v266 = vld [vmem:[%s2] sm:$0x1]
        %v267 = vld [vmem:[%s3] sm:$0xff]
        %v268 = vpack.c.bf16 %v235, %v234
        %v269 = vpack.c.bf16 %v237, %v236
        %v270 = vpack.c.bf16 %v239, %v238
        %v271 = vpack.c.bf16 %v241, %v240
        %v272 = vpack.c.bf16 %v243, %v242
        %v273 = vpack.c.bf16 %v245, %v244
        %v274 = vpack.c.bf16 %v247, %v246
        %v275 = vpack.c.bf16 %v249, %v248
        %v277 = vlaneseq
        %v278 = vshrl.u32 %v277, 7
        %v279 = vsub.s32 0, %v278
        %v280 = vrot.slane %v266, %v279
        %v298 = vunpack.c.l.b16 %v250
        %v299 = vunpack.c.l.b16 %v251
        %v300 = vunpack.c.l.b16 %v252
        %v301 = vunpack.c.l.b16 %v253
        %v302 = vunpack.c.l.b16 %v254
        %v303 = vunpack.c.l.b16 %v255
        %v304 = vunpack.c.l.b16 %v256
        %v305 = vunpack.c.l.b16 %v257
        %v306 = vunpack.c.l.b16 %v258
        %v307 = vunpack.c.l.b16 %v259
        %v308 = vunpack.c.l.b16 %v260
        %v309 = vunpack.c.l.b16 %v261
        %v310 = vunpack.c.l.b16 %v262
        %v311 = vunpack.c.l.b16 %v263
        %v312 = vunpack.c.l.b16 %v264
        %v313 = vunpack.c.l.b16 %v265
        %v314 = vpack.c.b16 %v299, %v298
        %v315 = vpack.c.b16 %v301, %v300
        %v316 = vpack.c.b16 %v303, %v302
        %v317 = vpack.c.b16 %v305, %v304
        %v318 = vpack.c.b16 %v307, %v306
        %v319 = vpack.c.b16 %v309, %v308
        %v320 = vpack.c.b16 %v311, %v310
        %v321 = vpack.c.b16 %v313, %v312
        %330 = vmatprep.subr.bf16.mxu0 0
        %331 = vmatpush1.bf16.msra.mxu0 %v314
        %332 = vmatprep.subr.bf16.mxu0 0
        %333 = vmatpush1.bf16.msra.mxu0 %v315
        %334 = vmatprep.subr.bf16.mxu0 0
        %335 = vmatpush1.bf16.msra.mxu0 %v316
        %336 = vmatprep.subr.bf16.mxu0 0
        %337 = vmatpush1.bf16.msra.mxu0 %v317
        %338 = vmatprep.subr.bf16.mxu0 0
        %339 = vmatpush1.bf16.msra.mxu0 %v318
        %340 = vmatprep.subr.bf16.mxu0 0
        %341 = vmatpush1.bf16.msra.mxu0 %v319
        %342 = vmatprep.subr.bf16.mxu0 0
        %343 = vmatpush1.bf16.msra.mxu0 %v320
        %344 = vmatprep.subr.bf16.mxu0 0
        %345 = vmatpush1.bf16.msra.mxu0 %v321
        %346 = vmatprep.subr.bf16.mxu0 0
        %347 = vmatpush1.bf16.msra.mxu0 0
        %348 = vmatprep.subr.bf16.mxu0 0
        %349 = vmatpush1.bf16.msra.mxu0 0
        %350 = vmatprep.subr.bf16.mxu0 0
        %351 = vmatpush1.bf16.msra.mxu0 0
        %352 = vmatprep.subr.bf16.mxu0 0
        %353 = vmatpush1.bf16.msra.mxu0 0
        %354 = vmatprep.subr.bf16.mxu0 0
        %355 = vmatpush1.bf16.msra.mxu0 0
        %356 = vmatprep.subr.bf16.mxu0 0
        %357 = vmatpush1.bf16.msra.mxu0 0
        %358 = vmatprep.subr.bf16.mxu0 0
        %359 = vmatpush1.bf16.msra.mxu0 0
        %360 = vmatprep.subr.bf16.mxu0 0
        %361 = vmatpush1.bf16.msra.mxu0 0
        %362 = vmatprep.mubr.bf16.mxu0 0
        %363 = vmatmul.mubr.bf16.gmra.mrb[0].mxu0 %v268
        %v364 = vpop.f32.mrb[0].mxu0
        %v365 = vadd.f32 %v280, %v364
        %v366 = vpop.f32.mrb[0].mxu0
        %v367 = vpop.f32.mrb[0].mxu0
        %v368 = vadd.f32 %v280, %v367
        %v369 = vpop.f32.mrb[0].mxu0
        %370 = vmatprep.mubr.bf16.mxu0 0
        %371 = vmatmul.mubr.bf16.gmra.mrb[0].mxu0 %v269
        %v372 = vpop.f32.mrb[0].mxu0
        %v373 = vadd.f32 %v280, %v372
        %v374 = vpop.f32.mrb[0].mxu0
        %v375 = vpop.f32.mrb[0].mxu0
        %v376 = vadd.f32 %v280, %v375
        %v377 = vpop.f32.mrb[0].mxu0
        %378 = vmatprep.mubr.bf16.mxu0 0
        %379 = vmatmul.mubr.bf16.gmra.mrb[0].mxu0 %v270
        %v380 = vpop.f32.mrb[0].mxu0
        %v381 = vadd.f32 %v280, %v380
        %v382 = vpop.f32.mrb[0].mxu0
        %v383 = vpop.f32.mrb[0].mxu0
        %v384 = vadd.f32 %v280, %v383
        %v385 = vpop.f32.mrb[0].mxu0
        %386 = vmatprep.mubr.bf16.mxu0 0
        %387 = vmatmul.mubr.bf16.gmra.mrb[0].mxu0 %v271
        %v388 = vpop.f32.mrb[0].mxu0
        %v389 = vadd.f32 %v280, %v388
        %v390 = vpop.f32.mrb[0].mxu0
        %v391 = vpop.f32.mrb[0].mxu0
        %v392 = vadd.f32 %v280, %v391
        %v393 = vpop.f32.mrb[0].mxu0
        %394 = vmatprep.mubr.bf16.mxu0 0
        %395 = vmatmul.mubr.bf16.gmra.mrb[0].mxu0 %v272
        %v396 = vpop.f32.mrb[0].mxu0
        %v397 = vadd.f32 %v280, %v396
        %v398 = vpop.f32.mrb[0].mxu0
        %v399 = vpop.f32.mrb[0].mxu0
        %v400 = vadd.f32 %v280, %v399
        %v401 = vpop.f32.mrb[0].mxu0
        %402 = vmatprep.mubr.bf16.mxu0 0
        %403 = vmatmul.mubr.bf16.gmra.mrb[0].mxu0 %v273
        %v404 = vpop.f32.mrb[0].mxu0
        %v405 = vadd.f32 %v280, %v404
        %v406 = vpop.f32.mrb[0].mxu0
        %v407 = vpop.f32.mrb[0].mxu0
        %v408 = vadd.f32 %v280, %v407
        %v409 = vpop.f32.mrb[0].mxu0
        %410 = vmatprep.mubr.bf16.mxu0 0
        %411 = vmatmul.mubr.bf16.gmra.mrb[0].mxu0 %v274
        %v412 = vpop.f32.mrb[0].mxu0
        %v413 = vadd.f32 %v280, %v412
        %v414 = vpop.f32.mrb[0].mxu0
        %v415 = vpop.f32.mrb[0].mxu0
        %v416 = vadd.f32 %v280, %v415
        %v417 = vpop.f32.mrb[0].mxu0
        %418 = vmatprep.mubr.bf16.mxu0 0
        %419 = vmatmul.mubr.bf16.gmra.mrb[0].mxu0 %v275
        %v420 = vpop.f32.mrb[0].mxu0
        %v421 = vadd.f32 %v280, %v420
        %v422 = vpop.f32.mrb[0].mxu0
        %v423 = vpop.f32.mrb[0].mxu0
        %v424 = vadd.f32 %v280, %v423
        %v425 = vpop.f32.mrb[0].mxu0
        %426 = vdwg.mxu0
        %v427 = vtanh.pop %v365
        %v428 = vtanh.pop %v368
        %v429 = vtanh.pop %v373
        %v430 = vtanh.pop %v376
        %v431 = vtanh.pop %v381
        %v432 = vtanh.pop %v384
        %v433 = vtanh.pop %v389
        %v434 = vtanh.pop %v392
        %v435 = vtanh.pop %v397
        %v436 = vtanh.pop %v400
        %v437 = vtanh.pop %v405
        %v438 = vtanh.pop %v408
        %v439 = vtanh.pop %v413
        %v440 = vtanh.pop %v416
        %v441 = vtanh.pop %v421
        %v442 = vtanh.pop %v424
        %v443 = vmul.f32 %v427, %v267
        %v444 = vmul.f32 %v428, %v267
        %v445 = vmul.f32 %v429, %v267
        %v446 = vmul.f32 %v430, %v267
        %v447 = vmul.f32 %v431, %v267
        %v448 = vmul.f32 %v432, %v267
        %v449 = vmul.f32 %v433, %v267
        %v450 = vmul.f32 %v434, %v267
        %v451 = vmul.f32 %v435, %v267
        %v452 = vmul.f32 %v436, %v267
        %v453 = vmul.f32 %v437, %v267
        %v454 = vmul.f32 %v438, %v267
        %v455 = vmul.f32 %v439, %v267
        %v456 = vmul.f32 %v440, %v267
        %v457 = vmul.f32 %v441, %v267
        %v458 = vmul.f32 %v442, %v267
        %459 = vadd.xlane.f32.xlu0 %v443
        %v460 = vpop.xlane.xlu0 %459
        %461 = vadd.xlane.f32.xlu0 %v444
        %v462 = vpop.xlane.xlu0 %461
        %463 = vadd.xlane.f32.xlu0 %v445
        %v464 = vpop.xlane.xlu0 %463
        %465 = vadd.xlane.f32.xlu0 %v446
        %v466 = vpop.xlane.xlu0 %465
        %467 = vadd.xlane.f32.xlu0 %v447
        %v468 = vpop.xlane.xlu0 %467
        %469 = vadd.xlane.f32.xlu0 %v448
        %v470 = vpop.xlane.xlu0 %469
        %471 = vadd.xlane.f32.xlu0 %v449
        %v472 = vpop.xlane.xlu0 %471
        %473 = vadd.xlane.f32.xlu0 %v450
        %v474 = vpop.xlane.xlu0 %473
        %475 = vadd.xlane.f32.xlu0 %v451
        %v476 = vpop.xlane.xlu0 %475
        %477 = vadd.xlane.f32.xlu0 %v452
        %v478 = vpop.xlane.xlu0 %477
        %479 = vadd.xlane.f32.xlu0 %v453
        %v480 = vpop.xlane.xlu0 %479
        %481 = vadd.xlane.f32.xlu0 %v454
        %v482 = vpop.xlane.xlu0 %481
        %483 = vadd.xlane.f32.xlu0 %v455
        %v484 = vpop.xlane.xlu0 %483
        %485 = vadd.xlane.f32.xlu0 %v456
        %v486 = vpop.xlane.xlu0 %485
        %487 = vadd.xlane.f32.xlu0 %v457
        %v488 = vpop.xlane.xlu0 %487
        %489 = vadd.xlane.f32.xlu0 %v458
        %v490 = vpop.xlane.xlu0 %489
        %v507 = vlaneseq
        %v508 = vand.u32 %v507, 127
        %v509 = vlaneseq
        %v510 = vshrl.u32 %v509, 7
        %v511 = vsub.s32 %v508, %v510
        %v512 = vrot.slane %v460, %v511
        %v513 = vlaneseq
        %v514 = vshrl.u32 %v513, 7
        %v515 = vsub.s32 %v508, %v514
        %v516 = vrot.slane %v462, %v515
        %v517 = vlaneseq
        %v518 = vshrl.u32 %v517, 7
        %v519 = vsub.s32 %v508, %v518
        %v520 = vrot.slane %v464, %v519
        %v521 = vlaneseq
        %v522 = vshrl.u32 %v521, 7
        %v523 = vsub.s32 %v508, %v522
        %v524 = vrot.slane %v466, %v523
        %v525 = vlaneseq
        %v526 = vshrl.u32 %v525, 7
        %v527 = vsub.s32 %v508, %v526
        %v528 = vrot.slane %v468, %v527
        %v529 = vlaneseq
        %v530 = vshrl.u32 %v529, 7
        %v531 = vsub.s32 %v508, %v530
        %v532 = vrot.slane %v470, %v531
        %v533 = vlaneseq
        %v534 = vshrl.u32 %v533, 7
        %v535 = vsub.s32 %v508, %v534
        %v536 = vrot.slane %v472, %v535
        %v537 = vlaneseq
        %v538 = vshrl.u32 %v537, 7
        %v539 = vsub.s32 %v508, %v538
        %v540 = vrot.slane %v474, %v539
        %v541 = vlaneseq
        %v542 = vshrl.u32 %v541, 7
        %v543 = vsub.s32 %v508, %v542
        %v544 = vrot.slane %v476, %v543
        %v545 = vlaneseq
        %v546 = vshrl.u32 %v545, 7
        %v547 = vsub.s32 %v508, %v546
        %v548 = vrot.slane %v478, %v547
        %v549 = vlaneseq
        %v550 = vshrl.u32 %v549, 7
        %v551 = vsub.s32 %v508, %v550
        %v552 = vrot.slane %v480, %v551
        %v553 = vlaneseq
        %v554 = vshrl.u32 %v553, 7
        %v555 = vsub.s32 %v508, %v554
        %v556 = vrot.slane %v482, %v555
        %v557 = vlaneseq
        %v558 = vshrl.u32 %v557, 7
        %v559 = vsub.s32 %v508, %v558
        %v560 = vrot.slane %v484, %v559
        %v561 = vlaneseq
        %v562 = vshrl.u32 %v561, 7
        %v563 = vsub.s32 %v508, %v562
        %v564 = vrot.slane %v486, %v563
        %v565 = vlaneseq
        %v566 = vshrl.u32 %v565, 7
        %v567 = vsub.s32 %v508, %v566
        %v568 = vrot.slane %v488, %v567
        %v569 = vlaneseq
        %v570 = vshrl.u32 %v569, 7
        %v571 = vsub.s32 %v508, %v570
        %v572 = vrot.slane %v490, %v571
        %vm573 = vcmask 1041409
        %v574 = vsel %vm573, %v516, %v512
        %vm575 = vcmask 1042434
        %v576 = vsel %vm575, %v520, %v574
        %vm577 = vcmask 1043459
        %v578 = vsel %vm577, %v524, %v576
        %vm579 = vcmask 1044484
        %v580 = vsel %vm579, %v528, %v578
        %vm581 = vcmask 1045509
        %v582 = vsel %vm581, %v532, %v580
        %vm583 = vcmask 1046534
        %v584 = vsel %vm583, %v536, %v582
        %vm585 = vcmask 1047559
        %v586 = vsel %vm585, %v540, %v584
        %v587 = vsel %vm573, %v548, %v544
        %v588 = vsel %vm575, %v552, %v587
        %v589 = vsel %vm577, %v556, %v588
        %v590 = vsel %vm579, %v560, %v589
        %v591 = vsel %vm581, %v564, %v590
        %v592 = vsel %vm583, %v568, %v591
        %v593 = vsel %vm585, %v572, %v592
        %vm596 = vcmask 64512
        %v597 = vsel %vm596, %v586, -inf
        %598 = vmax.xlane.f32.xlu0 %v597
        %v599 = vpop.xlane.xlu0 %598
        %v600 = vsel %vm596, %v593, -inf
        %601 = vmax.xlane.f32.xlu0 %v600
        %v602 = vpop.xlane.xlu0 %601
        %v605 = vlaneseq
        %v606 = vshrl.u32 %v605, 7
        %v607 = vsub.s32 0, %v606
        %v608 = vrot.slane %v599, %v607
        %v609 = vlaneseq
        %v610 = vshrl.u32 %v609, 7
        %v611 = vsub.s32 1, %v610
        %v612 = vrot.slane %v599, %v611
        %v613 = vlaneseq
        %v614 = vshrl.u32 %v613, 7
        %v615 = vsub.s32 2, %v614
        %v616 = vrot.slane %v599, %v615
        %v617 = vlaneseq
        %v618 = vshrl.u32 %v617, 7
        %v619 = vsub.s32 3, %v618
        %v620 = vrot.slane %v599, %v619
        %v621 = vlaneseq
        %v622 = vshrl.u32 %v621, 7
        %v623 = vsub.s32 4, %v622
        %v624 = vrot.slane %v599, %v623
        %v625 = vlaneseq
        %v626 = vshrl.u32 %v625, 7
        %v627 = vsub.s32 5, %v626
        %v628 = vrot.slane %v599, %v627
        %v629 = vlaneseq
        %v630 = vshrl.u32 %v629, 7
        %v631 = vsub.s32 6, %v630
        %v632 = vrot.slane %v599, %v631
        %v633 = vlaneseq
        %v634 = vshrl.u32 %v633, 7
        %v635 = vsub.s32 7, %v634
        %v636 = vrot.slane %v599, %v635
        %v637 = vlaneseq
        %v638 = vshrl.u32 %v637, 7
        %v639 = vsub.s32 0, %v638
        %v640 = vrot.slane %v602, %v639
        %v641 = vlaneseq
        %v642 = vshrl.u32 %v641, 7
        %v643 = vsub.s32 1, %v642
        %v644 = vrot.slane %v602, %v643
        %v645 = vlaneseq
        %v646 = vshrl.u32 %v645, 7
        %v647 = vsub.s32 2, %v646
        %v648 = vrot.slane %v602, %v647
        %v649 = vlaneseq
        %v650 = vshrl.u32 %v649, 7
        %v651 = vsub.s32 3, %v650
        %v652 = vrot.slane %v602, %v651
        %v653 = vlaneseq
        %v654 = vshrl.u32 %v653, 7
        %v655 = vsub.s32 4, %v654
        %v656 = vrot.slane %v602, %v655
        %v657 = vlaneseq
        %v658 = vshrl.u32 %v657, 7
        %v659 = vsub.s32 5, %v658
        %v660 = vrot.slane %v602, %v659
        %v661 = vlaneseq
        %v662 = vshrl.u32 %v661, 7
        %v663 = vsub.s32 6, %v662
        %v664 = vrot.slane %v602, %v663
        %v665 = vlaneseq
        %v666 = vshrl.u32 %v665, 7
        %v667 = vsub.s32 7, %v666
        %v668 = vrot.slane %v602, %v667
        %v685 = vsub.f32 %v460, %v608
        %v686 = vsub.f32 %v462, %v612
        %v687 = vsub.f32 %v464, %v616
        %v688 = vsub.f32 %v466, %v620
        %v689 = vsub.f32 %v468, %v624
        %v690 = vsub.f32 %v470, %v628
        %v691 = vsub.f32 %v472, %v632
        %v692 = vsub.f32 %v474, %v636
        %v693 = vsub.f32 %v476, %v640
        %v694 = vsub.f32 %v478, %v644
        %v695 = vsub.f32 %v480, %v648
        %v696 = vsub.f32 %v482, %v652
        %v697 = vsub.f32 %v484, %v656
        %v698 = vsub.f32 %v486, %v660
        %v699 = vsub.f32 %v488, %v664
        %v700 = vsub.f32 %v490, %v668
        %v701 = vmul.f32 %v685, 1.442695
        %v702 = vpow.pop %v701
        %v703 = vmul.f32 %v686, 1.442695
        %v704 = vpow.pop %v703
        %v705 = vmul.f32 %v687, 1.442695
        %v706 = vpow.pop %v705
        %v707 = vmul.f32 %v688, 1.442695
        %v708 = vpow.pop %v707
        %v709 = vmul.f32 %v689, 1.442695
        %v710 = vpow.pop %v709
        %v711 = vmul.f32 %v690, 1.442695
        %v712 = vpow.pop %v711
        %v713 = vmul.f32 %v691, 1.442695
        %v714 = vpow.pop %v713
        %v715 = vmul.f32 %v692, 1.442695
        %v716 = vpow.pop %v715
        %v717 = vmul.f32 %v693, 1.442695
        %v718 = vpow.pop %v717
        %v719 = vmul.f32 %v694, 1.442695
        %v720 = vpow.pop %v719
        %v721 = vmul.f32 %v695, 1.442695
        %v722 = vpow.pop %v721
        %v723 = vmul.f32 %v696, 1.442695
        %v724 = vpow.pop %v723
        %v725 = vmul.f32 %v697, 1.442695
        %v726 = vpow.pop %v725
        %v727 = vmul.f32 %v698, 1.442695
        %v728 = vpow.pop %v727
        %v729 = vmul.f32 %v699, 1.442695
        %v730 = vpow.pop %v729
        %v731 = vmul.f32 %v700, 1.442695
        %v732 = vpow.pop %v731
        %749 = vset.pattern.permute.xlu0 0
        %750 = vperm.xlu0 %749, %v702
        %v751 = vpop.permute.xlu0 %750
        %752 = vset.pattern.permute.xlu0 0
        %753 = vperm.xlu0 %752, %v704
        %v754 = vpop.permute.xlu0 %753
        %755 = vset.pattern.permute.xlu0 0
        %756 = vperm.xlu0 %755, %v706
        %v757 = vpop.permute.xlu0 %756
        %758 = vset.pattern.permute.xlu0 0
        %759 = vperm.xlu0 %758, %v708
        %v760 = vpop.permute.xlu0 %759
        %761 = vset.pattern.permute.xlu0 0
        %762 = vperm.xlu0 %761, %v710
        %v763 = vpop.permute.xlu0 %762
        %764 = vset.pattern.permute.xlu0 0
        %765 = vperm.xlu0 %764, %v712
        %v766 = vpop.permute.xlu0 %765
        %767 = vset.pattern.permute.xlu0 0
        %768 = vperm.xlu0 %767, %v714
        %v769 = vpop.permute.xlu0 %768
        %770 = vset.pattern.permute.xlu0 0
        %771 = vperm.xlu0 %770, %v716
        %v772 = vpop.permute.xlu0 %771
        %773 = vset.pattern.permute.xlu0 0
        %774 = vperm.xlu0 %773, %v718
        %v775 = vpop.permute.xlu0 %774
        %776 = vset.pattern.permute.xlu0 0
        %777 = vperm.xlu0 %776, %v720
        %v778 = vpop.permute.xlu0 %777
        %779 = vset.pattern.permute.xlu0 0
        %780 = vperm.xlu0 %779, %v722
        %v781 = vpop.permute.xlu0 %780
        %782 = vset.pattern.permute.xlu0 0
        %783 = vperm.xlu0 %782, %v724
        %v784 = vpop.permute.xlu0 %783
        %785 = vset.pattern.permute.xlu0 0
        %786 = vperm.xlu0 %785, %v726
        %v787 = vpop.permute.xlu0 %786
        %788 = vset.pattern.permute.xlu0 0
        %789 = vperm.xlu0 %788, %v728
        %v790 = vpop.permute.xlu0 %789
        %791 = vset.pattern.permute.xlu0 0
        %792 = vperm.xlu0 %791, %v730
        %v793 = vpop.permute.xlu0 %792
        %794 = vset.pattern.permute.xlu0 0
        %795 = vperm.xlu0 %794, %v732
        %v796 = vpop.permute.xlu0 %795
        %v797 = vlaneseq
        %v798 = vshrl.u32 %v797, 7
        %v799 = vsub.s32 %v508, %v798
        %v800 = vrot.slane %v751, %v799
        %v801 = vlaneseq
        %v802 = vshrl.u32 %v801, 7
        %v803 = vsub.s32 %v508, %v802
        %v804 = vrot.slane %v754, %v803
        %v805 = vlaneseq
        %v806 = vshrl.u32 %v805, 7
        %v807 = vsub.s32 %v508, %v806
        %v808 = vrot.slane %v757, %v807
        %v809 = vlaneseq
        %v810 = vshrl.u32 %v809, 7
        %v811 = vsub.s32 %v508, %v810
        %v812 = vrot.slane %v760, %v811
        %v813 = vlaneseq
        %v814 = vshrl.u32 %v813, 7
        %v815 = vsub.s32 %v508, %v814
        %v816 = vrot.slane %v763, %v815
        %v817 = vlaneseq
        %v818 = vshrl.u32 %v817, 7
        %v819 = vsub.s32 %v508, %v818
        %v820 = vrot.slane %v766, %v819
        %v821 = vlaneseq
        %v822 = vshrl.u32 %v821, 7
        %v823 = vsub.s32 %v508, %v822
        %v824 = vrot.slane %v769, %v823
        %v825 = vlaneseq
        %v826 = vshrl.u32 %v825, 7
        %v827 = vsub.s32 %v508, %v826
        %v828 = vrot.slane %v772, %v827
        %v829 = vlaneseq
        %v830 = vshrl.u32 %v829, 7
        %v831 = vsub.s32 %v508, %v830
        %v832 = vrot.slane %v775, %v831
        %v833 = vlaneseq
        %v834 = vshrl.u32 %v833, 7
        %v835 = vsub.s32 %v508, %v834
        %v836 = vrot.slane %v778, %v835
        %v837 = vlaneseq
        %v838 = vshrl.u32 %v837, 7
        %v839 = vsub.s32 %v508, %v838
        %v840 = vrot.slane %v781, %v839
        %v841 = vlaneseq
        %v842 = vshrl.u32 %v841, 7
        %v843 = vsub.s32 %v508, %v842
        %v844 = vrot.slane %v784, %v843
        %v845 = vlaneseq
        %v846 = vshrl.u32 %v845, 7
        %v847 = vsub.s32 %v508, %v846
        %v848 = vrot.slane %v787, %v847
        %v849 = vlaneseq
        %v850 = vshrl.u32 %v849, 7
        %v851 = vsub.s32 %v508, %v850
        %v852 = vrot.slane %v790, %v851
        %v853 = vlaneseq
        %v854 = vshrl.u32 %v853, 7
        %v855 = vsub.s32 %v508, %v854
        %v856 = vrot.slane %v793, %v855
        %v857 = vlaneseq
        %v858 = vshrl.u32 %v857, 7
        %v859 = vsub.s32 %v508, %v858
        %v860 = vrot.slane %v796, %v859
        %v861 = vsel %vm573, %v804, %v800
        %v862 = vsel %vm575, %v808, %v861
        %v863 = vsel %vm577, %v812, %v862
        %v864 = vsel %vm579, %v816, %v863
        %v865 = vsel %vm581, %v820, %v864
        %v866 = vsel %vm583, %v824, %v865
        %v867 = vsel %vm585, %v828, %v866
        %v868 = vsel %vm573, %v836, %v832
        %v869 = vsel %vm575, %v840, %v868
        %v870 = vsel %vm577, %v844, %v869
        %v871 = vsel %vm579, %v848, %v870
        %v872 = vsel %vm581, %v852, %v871
        %v873 = vsel %vm583, %v856, %v872
        %v874 = vsel %vm585, %v860, %v873
        %v877 = vsel %vm596, %v867, 0.0
        %878 = vadd.xlane.f32.xlu0 %v877
        %v879 = vpop.xlane.xlu0 %878
        %v880 = vsel %vm596, %v874, 0.0
        %881 = vadd.xlane.f32.xlu0 %v880
        %v882 = vpop.xlane.xlu0 %881
        %v885 = vlaneseq
        %v886 = vshrl.u32 %v885, 7
        %v887 = vsub.s32 0, %v886
        %v888 = vrot.slane %v879, %v887
        %v889 = vlaneseq
        %v890 = vshrl.u32 %v889, 7
        %v891 = vsub.s32 1, %v890
        %v892 = vrot.slane %v879, %v891
        %v893 = vlaneseq
        %v894 = vshrl.u32 %v893, 7
        %v895 = vsub.s32 2, %v894
        %v896 = vrot.slane %v879, %v895
        %v897 = vlaneseq
        %v898 = vshrl.u32 %v897, 7
        %v899 = vsub.s32 3, %v898
        %v900 = vrot.slane %v879, %v899
        %v901 = vlaneseq
        %v902 = vshrl.u32 %v901, 7
        %v903 = vsub.s32 4, %v902
        %v904 = vrot.slane %v879, %v903
        %v905 = vlaneseq
        %v906 = vshrl.u32 %v905, 7
        %v907 = vsub.s32 5, %v906
        %v908 = vrot.slane %v879, %v907
        %v909 = vlaneseq
        %v910 = vshrl.u32 %v909, 7
        %v911 = vsub.s32 6, %v910
        %v912 = vrot.slane %v879, %v911
        %v913 = vlaneseq
        %v914 = vshrl.u32 %v913, 7
        %v915 = vsub.s32 7, %v914
        %v916 = vrot.slane %v879, %v915
        %v917 = vlaneseq
        %v918 = vshrl.u32 %v917, 7
        %v919 = vsub.s32 0, %v918
        %v920 = vrot.slane %v882, %v919
        %v921 = vlaneseq
        %v922 = vshrl.u32 %v921, 7
        %v923 = vsub.s32 1, %v922
        %v924 = vrot.slane %v882, %v923
        %v925 = vlaneseq
        %v926 = vshrl.u32 %v925, 7
        %v927 = vsub.s32 2, %v926
        %v928 = vrot.slane %v882, %v927
        %v929 = vlaneseq
        %v930 = vshrl.u32 %v929, 7
        %v931 = vsub.s32 3, %v930
        %v932 = vrot.slane %v882, %v931
        %v933 = vlaneseq
        %v934 = vshrl.u32 %v933, 7
        %v935 = vsub.s32 4, %v934
        %v936 = vrot.slane %v882, %v935
        %v937 = vlaneseq
        %v938 = vshrl.u32 %v937, 7
        %v939 = vsub.s32 5, %v938
        %v940 = vrot.slane %v882, %v939
        %v941 = vlaneseq
        %v942 = vshrl.u32 %v941, 7
        %v943 = vsub.s32 6, %v942
        %v944 = vrot.slane %v882, %v943
        %v945 = vlaneseq
        %v946 = vshrl.u32 %v945, 7
        %v947 = vsub.s32 7, %v946
        %v948 = vrot.slane %v882, %v947
        %v965 = vrcp.pop %v888
        %v966 = vmul.f32 %v702, %v965
        %v967 = vrcp.pop %v892
        %v968 = vmul.f32 %v704, %v967
        %v969 = vrcp.pop %v896
        %v970 = vmul.f32 %v706, %v969
        %v971 = vrcp.pop %v900
        %v972 = vmul.f32 %v708, %v971
        %v973 = vrcp.pop %v904
        %v974 = vmul.f32 %v710, %v973
        %v975 = vrcp.pop %v908
        %v976 = vmul.f32 %v712, %v975
        %v977 = vrcp.pop %v912
        %v978 = vmul.f32 %v714, %v977
        %v979 = vrcp.pop %v916
        %v980 = vmul.f32 %v716, %v979
        %v981 = vrcp.pop %v920
        %v982 = vmul.f32 %v718, %v981
        %v983 = vrcp.pop %v924
        %v984 = vmul.f32 %v720, %v983
        %v985 = vrcp.pop %v928
        %v986 = vmul.f32 %v722, %v985
        %v987 = vrcp.pop %v932
        %v988 = vmul.f32 %v724, %v987
        %v989 = vrcp.pop %v936
        %v990 = vmul.f32 %v726, %v989
        %v991 = vrcp.pop %v940
        %v992 = vmul.f32 %v728, %v991
        %v993 = vrcp.pop %v944
        %v994 = vmul.f32 %v730, %v993
        %v995 = vrcp.pop %v948
        %v996 = vmul.f32 %v732, %v995
        %998 = vset.pattern.permute.xlu0 0
        %999 = vperm.xlu0 %998, %v966
        %v1000 = vpop.permute.xlu0 %999
        %1003 = vset.pattern.permute.xlu0 0
        %1004 = vperm.xlu0 %1003, %v968
        %v1005 = vpop.permute.xlu0 %1004
        %1008 = vset.pattern.permute.xlu0 0
        %1009 = vperm.xlu0 %1008, %v970
        %v1010 = vpop.permute.xlu0 %1009
        %1013 = vset.pattern.permute.xlu0 0
        %1014 = vperm.xlu0 %1013, %v972
        %v1015 = vpop.permute.xlu0 %1014
        %1018 = vset.pattern.permute.xlu0 0
        %1019 = vperm.xlu0 %1018, %v974
        %v1020 = vpop.permute.xlu0 %1019
        %1023 = vset.pattern.permute.xlu0 0
        %1024 = vperm.xlu0 %1023, %v976
        %v1025 = vpop.permute.xlu0 %1024
        %1028 = vset.pattern.permute.xlu0 0
        %1029 = vperm.xlu0 %1028, %v978
        %v1030 = vpop.permute.xlu0 %1029
        %1033 = vset.pattern.permute.xlu0 0
        %1034 = vperm.xlu0 %1033, %v980
        %v1035 = vpop.permute.xlu0 %1034
        %1038 = vset.pattern.permute.xlu0 0
        %1039 = vperm.xlu0 %1038, %v982
        %v1040 = vpop.permute.xlu0 %1039
        %1043 = vset.pattern.permute.xlu0 0
        %1044 = vperm.xlu0 %1043, %v984
        %v1045 = vpop.permute.xlu0 %1044
        %1048 = vset.pattern.permute.xlu0 0
        %1049 = vperm.xlu0 %1048, %v986
        %v1050 = vpop.permute.xlu0 %1049
        %1053 = vset.pattern.permute.xlu0 0
        %1054 = vperm.xlu0 %1053, %v988
        %v1055 = vpop.permute.xlu0 %1054
        %1058 = vset.pattern.permute.xlu0 0
        %1059 = vperm.xlu0 %1058, %v990
        %v1060 = vpop.permute.xlu0 %1059
        %1063 = vset.pattern.permute.xlu0 0
        %1064 = vperm.xlu0 %1063, %v992
        %v1065 = vpop.permute.xlu0 %1064
        %1068 = vset.pattern.permute.xlu0 0
        %1069 = vperm.xlu0 %1068, %v994
        %v1070 = vpop.permute.xlu0 %1069
        %1073 = vset.pattern.permute.xlu0 0
        %1074 = vperm.xlu0 %1073, %v996
        %v1075 = vpop.permute.xlu0 %1074
        %v1077 = vmul.f32 %v234, %v1000
        %v1078 = vmul.f32 %v235, %v1005
        %v1079 = vmul.f32 %v236, %v1010
        %v1080 = vmul.f32 %v237, %v1015
        %v1081 = vmul.f32 %v238, %v1020
        %v1082 = vmul.f32 %v239, %v1025
        %v1083 = vmul.f32 %v240, %v1030
        %v1084 = vmul.f32 %v241, %v1035
        %v1085 = vmul.f32 %v242, %v1040
        %v1086 = vmul.f32 %v243, %v1045
        %v1087 = vmul.f32 %v244, %v1050
        %v1088 = vmul.f32 %v245, %v1055
        %v1089 = vmul.f32 %v246, %v1060
        %v1090 = vmul.f32 %v247, %v1065
        %v1091 = vmul.f32 %v248, %v1070
        %v1092 = vmul.f32 %v249, %v1075
        %v1093 = vrot.slane %v1077, 4
        %v1094 = vadd.f32 %v1077, %v1093
        %v1095 = vrot.slane %v1094, 2
        %v1096 = vadd.f32 %v1094, %v1095
        %v1097 = vrot.slane %v1096, 1
        %v1098 = vadd.f32 %v1096, %v1097
        %v1099 = vrot.slane %v1078, 4
        %v1100 = vadd.f32 %v1078, %v1099
        %v1101 = vrot.slane %v1100, 2
        %v1102 = vadd.f32 %v1100, %v1101
        %v1103 = vrot.slane %v1102, 1
        %v1104 = vadd.f32 %v1102, %v1103
        %v1105 = vrot.slane %v1079, 4
        %v1106 = vadd.f32 %v1079, %v1105
        %v1107 = vrot.slane %v1106, 2
        %v1108 = vadd.f32 %v1106, %v1107
        %v1109 = vrot.slane %v1108, 1
        %v1110 = vadd.f32 %v1108, %v1109
        %v1111 = vrot.slane %v1080, 4
        %v1112 = vadd.f32 %v1080, %v1111
        %v1113 = vrot.slane %v1112, 2
        %v1114 = vadd.f32 %v1112, %v1113
        %v1115 = vrot.slane %v1114, 1
        %v1116 = vadd.f32 %v1114, %v1115
        %v1117 = vrot.slane %v1081, 4
        %v1118 = vadd.f32 %v1081, %v1117
        %v1119 = vrot.slane %v1118, 2
        %v1120 = vadd.f32 %v1118, %v1119
        %v1121 = vrot.slane %v1120, 1
        %v1122 = vadd.f32 %v1120, %v1121
        %v1123 = vrot.slane %v1082, 4
        %v1124 = vadd.f32 %v1082, %v1123
        %v1125 = vrot.slane %v1124, 2
        %v1126 = vadd.f32 %v1124, %v1125
        %v1127 = vrot.slane %v1126, 1
        %v1128 = vadd.f32 %v1126, %v1127
        %v1129 = vrot.slane %v1083, 4
        %v1130 = vadd.f32 %v1083, %v1129
        %v1131 = vrot.slane %v1130, 2
        %v1132 = vadd.f32 %v1130, %v1131
        %v1133 = vrot.slane %v1132, 1
        %v1134 = vadd.f32 %v1132, %v1133
        %v1135 = vrot.slane %v1084, 4
        %v1136 = vadd.f32 %v1084, %v1135
        %v1137 = vrot.slane %v1136, 2
        %v1138 = vadd.f32 %v1136, %v1137
        %v1139 = vrot.slane %v1138, 1
        %v1140 = vadd.f32 %v1138, %v1139
        %v1141 = vrot.slane %v1085, 4
        %v1142 = vadd.f32 %v1085, %v1141
        %v1143 = vrot.slane %v1142, 2
        %v1144 = vadd.f32 %v1142, %v1143
        %v1145 = vrot.slane %v1144, 1
        %v1146 = vadd.f32 %v1144, %v1145
        %v1147 = vrot.slane %v1086, 4
        %v1148 = vadd.f32 %v1086, %v1147
        %v1149 = vrot.slane %v1148, 2
        %v1150 = vadd.f32 %v1148, %v1149
        %v1151 = vrot.slane %v1150, 1
        %v1152 = vadd.f32 %v1150, %v1151
        %v1153 = vrot.slane %v1087, 4
        %v1154 = vadd.f32 %v1087, %v1153
        %v1155 = vrot.slane %v1154, 2
        %v1156 = vadd.f32 %v1154, %v1155
        %v1157 = vrot.slane %v1156, 1
        %v1158 = vadd.f32 %v1156, %v1157
        %v1159 = vrot.slane %v1088, 4
        %v1160 = vadd.f32 %v1088, %v1159
        %v1161 = vrot.slane %v1160, 2
        %v1162 = vadd.f32 %v1160, %v1161
        %v1163 = vrot.slane %v1162, 1
        %v1164 = vadd.f32 %v1162, %v1163
        %v1165 = vrot.slane %v1089, 4
        %v1166 = vadd.f32 %v1089, %v1165
        %v1167 = vrot.slane %v1166, 2
        %v1168 = vadd.f32 %v1166, %v1167
        %v1169 = vrot.slane %v1168, 1
        %v1170 = vadd.f32 %v1168, %v1169
        %v1171 = vrot.slane %v1090, 4
        %v1172 = vadd.f32 %v1090, %v1171
        %v1173 = vrot.slane %v1172, 2
        %v1174 = vadd.f32 %v1172, %v1173
        %v1175 = vrot.slane %v1174, 1
        %v1176 = vadd.f32 %v1174, %v1175
        %v1177 = vrot.slane %v1091, 4
        %v1178 = vadd.f32 %v1091, %v1177
        %v1179 = vrot.slane %v1178, 2
        %v1180 = vadd.f32 %v1178, %v1179
        %v1181 = vrot.slane %v1180, 1
        %v1182 = vadd.f32 %v1180, %v1181
        %v1183 = vrot.slane %v1092, 4
        %v1184 = vadd.f32 %v1092, %v1183
        %v1185 = vrot.slane %v1184, 2
        %v1186 = vadd.f32 %v1184, %v1185
        %v1187 = vrot.slane %v1186, 1
        %v1188 = vadd.f32 %v1186, %v1187
        %v1205 = vsel %vm573, %v1104, %v1098
        %v1206 = vsel %vm575, %v1110, %v1205
        %v1207 = vsel %vm577, %v1116, %v1206
        %v1208 = vsel %vm579, %v1122, %v1207
        %v1209 = vsel %vm581, %v1128, %v1208
        %v1210 = vsel %vm583, %v1134, %v1209
        %v1211 = vsel %vm585, %v1140, %v1210
        %v1212 = vsel %vm573, %v1152, %v1146
        %v1213 = vsel %vm575, %v1158, %v1212
        %v1214 = vsel %vm577, %v1164, %v1213
        %v1215 = vsel %vm579, %v1170, %v1214
        %v1216 = vsel %vm581, %v1176, %v1215
        %v1217 = vsel %vm583, %v1182, %v1216
        %v1218 = vsel %vm585, %v1188, %v1217
        %1221 = vst [vmem:[%s230] sm:$0xff] %v1211
        %1222 = vst [vmem:[%s230 + $0x8] sm:$0xff] %v1218
        %s1223 = sand.u32 %s119, 1
        %s1224 = scalar_lea.sflag [#allocation4], %s1223
        %s1225 = sand.u32 %s119, 1
        %s1226 = smul.addr %s1225, 16
        %s1227 = scalar_lea.vmem [#allocation7], %s1226
        // Predicated region
        $region45: #{tpu_custom_call.1} parent=35 // pred_check
          %p1228 = pneg %p129
        $region46: #{tpu_custom_call.1} parent=35 // pred_check_branch
          %1230 = sbr.rel (%p1228) target = $region48
        $region47: #{tpu_custom_call.1} parent=35 // pred_region
          %s1231 = smul.u32 2, %s22
          %s1233 = ssub.s32 256, 256
          %1234 = vsyncadd %s1224, %s1233
          %s1235 = smul.addr %s1231, 128
          %s1236 = scalar_lea.hbm %s4, %s1235
          %s1237 = sshll.u32 %s1227, 4
          %s1238 = int_to_ptr.vmem [resolvable:$true] %s1237
          %1243 = dma.vmem_to_hbm [thread:$0]  %s1238, 256, %s1236, %s1224, 128, 128, 8
        $region48: #{tpu_custom_call.1} parent=35 // pred_fallthru
          _
      $region36: #{tpu_custom_call.1} parent=5 // pred_fallthru
        _
      %p1244 = scmp.le.s32.totalorder 2, %s17
      // Predicated region
      $region49: #{tpu_custom_call.1} parent=5 // pred_check
        %p1245 = pneg %p1244
      $region50: #{tpu_custom_call.1} parent=5 // pred_check_branch
        %1247 = sbr.rel (%p1245) target = $region52
      $region51: #{tpu_custom_call.1} parent=5 // pred_region
        %s1248 = ssub.s32 %s17, 2
        // Predicated region
        $region53: #{tpu_custom_call.1} parent=51 // pred_check
          %p1249 = pneg %p135
        $region54: #{tpu_custom_call.1} parent=51 // pred_check_branch
          %1251 = sbr.rel (%p1249) target = $region56
        $region55: #{tpu_custom_call.1} parent=51 // pred_region
          %s1252 = sand.u32 %s120, 1
          %s1253 = scalar_lea.sflag [#allocation4], %s1252
          %s1254 = sand.u32 %s120, 1
          %s1255 = smul.addr %s1254, 16
          %s1256 = scalar_lea.vmem [#allocation7], %s1255
          %1257 = dma.done %s1253, 256
        $region56: #{tpu_custom_call.1} parent=51 // pred_fallthru
          _
      $region52: #{tpu_custom_call.1} parent=5 // pred_fallthru
        _
    $region6: #{tpu_custom_call.1} parent=1 // loop_footer
      %s21 = sadd.s32 1, %s17
    $region7: #{tpu_custom_call.1} parent=1 // loop_footer_branch
      %16 = sbr.rel target = $region3
    $region8: #{tpu_custom_call.1} parent=1 // loop_exit
      _
    %1258 = vsyncpa [#allocation3], 1
    %s1259 = scalar_lea.sflag [#allocation3], 1
    %1260 = vsyncpa %s1259, 1
    %1261 = vsyncpa [#allocation6], 1
    %1262 = vsyncpa [#allocation4], 1
    %s1263 = scalar_lea.sflag [#allocation4], 1
    %1264 = vsyncpa %s1263, 1

</llo_original>
